<compile_context>
chip_gen: v6e
topology: v6e:2x2x1
jax: 0.10.0
libtpu: 0.0.40
codegen_flags: <defaults>
</compile_context>

<pallas_src>
import jax
import jax.numpy as jnp
from jax.experimental import pallas as pl
from jax.experimental.pallas import tpu as pltpu


def _mlp_kernel(x_ref, w1_ref, s1_ref, t1_ref,
                w2_ref, s2_ref, t2_ref,
                w3_ref, b3_ref, o_ref):
    # layer1: Linear (MXU, f32 acc) + folded eval-mode BatchNorm + ReLU (VPU).
    h = jnp.dot(x_ref[...], w1_ref[...], preferred_element_type=jnp.float32)
    h = jnp.maximum(h * s1_ref[...] + t1_ref[...], 0.0)
    # layer2: Linear + folded BatchNorm + ReLU.
    h = jnp.dot(h, w2_ref[...], preferred_element_type=jnp.float32)
    h = jnp.maximum(h * s2_ref[...] + t2_ref[...], 0.0)
    # layer3: Linear + Tanh, stored as the single real output column.
    h = jnp.dot(h, w3_ref[...], preferred_element_type=jnp.float32) + b3_ref[...]
    o_ref[...] = jnp.tanh(h)


def _round_up(v, m):
    return (v + m - 1) // m * m


def _choose_tile(n_rows, tile_n):
    """Batch tile: multiple of 8, big enough to amortize per-step overhead,
    capped so the grid keeps >= 2 steps (keeps both v7x TensorCores busy)."""
    half = _round_up(max(pl.cdiv(n_rows, 2), 8), 8)
    tile = min(_round_up(tile_n, 8), half)
    if tile >= n_rows:
        # Single tile: a block dim equal to the full array dim is always legal.
        tile = n_rows
    return tile


def batch_net_forward(x, params, *, tile_n=4096):
    """x: (N, in_dim) float32. params: weights + BN running stats. Returns (N, 1)."""
    eps = 1e-5
    N, in_dim = x.shape
    h1 = params["w1"].shape[1]
    h2 = params["w2"].shape[1]
    out_dim = params["w3"].shape[1]

    # Fold BatchNorm (eval mode) + Linear bias into per-feature scale/shift
    # applied right after each matmul:  y = (x@W)*scale + (b-mean)*scale + beta.
    def fold(bias, gamma, beta, mean, var):
        scale = gamma * jax.lax.rsqrt(var + eps)
        shift = (bias - mean) * scale + beta
        return (scale[None, :].astype(jnp.float32),
                shift[None, :].astype(jnp.float32))

    s1, t1 = fold(params["b1"], params["g1"], params["be1"],
                  params["m1"], params["v1"])
    s2, t2 = fold(params["b2"], params["g2"], params["be2"],
                  params["m2"], params["v2"])

    w1 = params["w1"].astype(jnp.float32)
    w2 = params["w2"].astype(jnp.float32)
    w3 = params["w3"].astype(jnp.float32)
    b3 = params["b3"].reshape(1, out_dim).astype(jnp.float32)
    residents = (w1, s1, t1, w2, s2, t2, w3, b3)

    tile = _choose_tile(N, tile_n)
    grid_steps = pl.cdiv(N, tile)

    # Advisory cost estimate matching what the kernel actually executes
    # (ragged tail rows are still pushed through the MXU, then masked on store).
    rows = grid_steps * tile
    resident_bytes = sum(int(a.size) * a.dtype.itemsize for a in residents)
    cost = pl.CostEstimate(
        flops=2 * rows * (in_dim * h1 + h1 * h2 + h2 * out_dim),
        transcendentals=rows * out_dim,
        bytes_accessed=(rows * in_dim * x.dtype.itemsize
                        + resident_bytes
                        + rows * out_dim * 4))

    def run(single_buffer_residents):
        if single_buffer_residents:
            def resident_spec(a):
                return pl.BlockSpec(a.shape, lambda i: (0, 0),
                                    pipeline_mode=pl.Buffered(1))
        else:
            def resident_spec(a):
                return pl.BlockSpec(a.shape, lambda i: (0, 0))

        return pl.pallas_call(
            _mlp_kernel,
            out_shape=jax.ShapeDtypeStruct((N, out_dim), jnp.float32),
            grid=(grid_steps,),
            in_specs=[pl.BlockSpec((tile, in_dim), lambda i: (i, 0))]
                     + [resident_spec(a) for a in residents],
            out_specs=pl.BlockSpec((tile, out_dim), lambda i: (i, 0)),
            compiler_params=pltpu.CompilerParams(
                dimension_semantics=("parallel",)),
            cost_estimate=cost,
        )(x, *residents)

    try:
        return run(single_buffer_residents=True)
    except Exception:
        # pipeline_mode=pl.Buffered(1) on pallas_call BlockSpecs is not
        # accepted by every JAX release; retry with default double-buffering
        # (any genuine kernel error will simply re-raise here).
        return run(single_buffer_residents=False)


def _reference(x, params):
    eps = 1e-5
    h = x @ params["w1"] + params["b1"]
    h = (h - params["m1"]) / jnp.sqrt(params["v1"] + eps) * params["g1"] + params["be1"]
    h = jnp.maximum(h, 0.0)
    h = h @ params["w2"] + params["b2"]
    h = (h - params["m2"]) / jnp.sqrt(params["v2"] + eps) * params["g2"] + params["be2"]
    h = jnp.maximum(h, 0.0)
    h = h @ params["w3"] + params["b3"]
    return jnp.tanh(h)


def _init_params(key, in_dim, h1, h2):
    ks = jax.random.split(key, 12)
    return {
        # Linear weights stored as (in_features, out_features)
        "w1": jax.random.normal(ks[0], (in_dim, h1), jnp.float32) * 0.1,
        "b1": jax.random.normal(ks[1], (h1,), jnp.float32) * 0.1,
        "w2": jax.random.normal(ks[2], (h1, h2), jnp.float32) * 0.1,
        "b2": jax.random.normal(ks[3], (h2,), jnp.float32) * 0.1,
        "w3": jax.random.normal(ks[4], (h2, 1), jnp.float32) * 0.1,
        "b3": jax.random.normal(ks[5], (1,), jnp.float32) * 0.1,
        # BatchNorm1d #1 (gamma, beta, running_mean, running_var)
        "g1": 1.0 + 0.1 * jax.random.normal(ks[6], (h1,), jnp.float32),
        "be1": 0.1 * jax.random.normal(ks[7], (h1,), jnp.float32),
        "m1": 0.1 * jax.random.normal(ks[8], (h1,), jnp.float32),
        "v1": 1.0 + 0.1 * jax.nn.softplus(jax.random.normal(ks[9], (h1,), jnp.float32)),
        # BatchNorm1d #2
        "g2": 1.0 + 0.1 * jax.random.normal(ks[10], (h2,), jnp.float32),
        "be2": 0.1 * jax.random.normal(ks[11], (h2,), jnp.float32),
        "m2": jnp.zeros((h2,), jnp.float32),
        "v2": jnp.ones((h2,), jnp.float32),
    }


if __name__ == "__main__":
    key = jax.random.PRNGKey(0)
    kx, kp = jax.random.split(key)

    batch, in_dim, n_hidden_1, n_hidden_2 = 8, 16, 32, 32
    x = jax.random.normal(kx, (batch, in_dim), jnp.float32)
    params = _init_params(kp, in_dim, n_hidden_1, n_hidden_2)

    out = batch_net_forward(x, params)
    out = jax.block_until_ready(out)

    ref = _reference(x, params)
    assert out.shape == (batch, 1)
    # f32 operands throughout; loose bound only covers the TPU MXU's default
    # matmul precision (bf16 multiplies) vs. the XLA f32 reference.
    assert jnp.allclose(out, ref, atol=2e-2, rtol=2e-2), (
        jnp.max(jnp.abs(out - ref)))

    print("KERNEL_OK")
</pallas_src>

<mosaic_0001>
module attributes {stable_mosaic.version = 11 : i64} {
  func.func @_mlp_kernel(%arg0: i32, %arg1: memref<8x16xf32, #tpu.memory_space<vmem>>, %arg2: memref<16x32xf32, #tpu.memory_space<vmem>>, %arg3: memref<1x32xf32, #tpu.memory_space<vmem>>, %arg4: memref<1x32xf32, #tpu.memory_space<vmem>>, %arg5: memref<32x32xf32, #tpu.memory_space<vmem>>, %arg6: memref<1x32xf32, #tpu.memory_space<vmem>>, %arg7: memref<1x32xf32, #tpu.memory_space<vmem>>, %arg8: memref<32x1xf32, #tpu.memory_space<vmem>>, %arg9: memref<1x1xf32, #tpu.memory_space<vmem>>, %arg10: memref<8x1xf32, #tpu.memory_space<vmem>>) attributes {dimension_semantics = [#tpu.dimension_semantics<parallel>], iteration_bounds = array<i64: 1>, scalar_prefetch = 0 : i64, scratch_operands = 0 : i64, tpu.core_type = #tpu.core_type<tc>, window_params = [{transform_indices = @transform_0, window_bounds = array<i64: 8, 16>}, {pipeline_mode = #tpu.pipeline_mode<synchronous>, transform_indices = @transform_1, window_bounds = array<i64: 16, 32>}, {pipeline_mode = #tpu.pipeline_mode<synchronous>, transform_indices = @transform_2, window_bounds = array<i64: 1, 32>}, {pipeline_mode = #tpu.pipeline_mode<synchronous>, transform_indices = @transform_3, window_bounds = array<i64: 1, 32>}, {pipeline_mode = #tpu.pipeline_mode<synchronous>, transform_indices = @transform_4, window_bounds = array<i64: 32, 32>}, {pipeline_mode = #tpu.pipeline_mode<synchronous>, transform_indices = @transform_5, window_bounds = array<i64: 1, 32>}, {pipeline_mode = #tpu.pipeline_mode<synchronous>, transform_indices = @transform_6, window_bounds = array<i64: 1, 32>}, {pipeline_mode = #tpu.pipeline_mode<synchronous>, transform_indices = @transform_7, window_bounds = array<i64: 32, 1>}, {pipeline_mode = #tpu.pipeline_mode<synchronous>, transform_indices = @transform_8, window_bounds = array<i64: 1, 1>}, {transform_indices = @transform_9, window_bounds = array<i64: 8, 1>}]} {
    %c0 = arith.constant 0 : index
    %c0_0 = arith.constant 0 : index
    %0 = vector.load %arg1[%c0, %c0_0] : memref<8x16xf32, #tpu.memory_space<vmem>>, vector<8x16xf32>
    %c0_1 = arith.constant 0 : index
    %c0_2 = arith.constant 0 : index
    %1 = vector.load %arg2[%c0_1, %c0_2] : memref<16x32xf32, #tpu.memory_space<vmem>>, vector<16x32xf32>
    %cst = arith.constant dense<0.000000e+00> : vector<8x32xf32>
    %2 = tpu.matmul %0, %1, %cst {dimension_numbers = #tpu.dot_dimension_numbers<[1], [0], [0], [1], [0, 0, 1, 1], [], []>} : vector<8x16xf32>, vector<16x32xf32>, vector<8x32xf32> -> vector<8x32xf32>
    %c0_3 = arith.constant 0 : index
    %c0_4 = arith.constant 0 : index
    %3 = vector.load %arg3[%c0_3, %c0_4] : memref<1x32xf32, #tpu.memory_space<vmem>>, vector<1x32xf32>
    %4 = vector.broadcast %3 : vector<1x32xf32> to vector<8x32xf32>
    %5 = arith.mulf %2, %4 : vector<8x32xf32>
    %c0_5 = arith.constant 0 : index
    %c0_6 = arith.constant 0 : index
    %6 = vector.load %arg4[%c0_5, %c0_6] : memref<1x32xf32, #tpu.memory_space<vmem>>, vector<1x32xf32>
    %7 = vector.broadcast %6 : vector<1x32xf32> to vector<8x32xf32>
    %8 = arith.addf %5, %7 : vector<8x32xf32>
    %cst_7 = arith.constant 0.000000e+00 : f32
    %9 = vector.broadcast %cst_7 : f32 to vector<8x32xf32>
    %10 = arith.maximumf %8, %9 : vector<8x32xf32>
    %c0_8 = arith.constant 0 : index
    %c0_9 = arith.constant 0 : index
    %11 = vector.load %arg5[%c0_8, %c0_9] : memref<32x32xf32, #tpu.memory_space<vmem>>, vector<32x32xf32>
    %cst_10 = arith.constant dense<0.000000e+00> : vector<8x32xf32>
    %12 = tpu.matmul %10, %11, %cst_10 {dimension_numbers = #tpu.dot_dimension_numbers<[1], [0], [0], [1], [0, 0, 1, 1], [], []>} : vector<8x32xf32>, vector<32x32xf32>, vector<8x32xf32> -> vector<8x32xf32>
    %c0_11 = arith.constant 0 : index
    %c0_12 = arith.constant 0 : index
    %13 = vector.load %arg6[%c0_11, %c0_12] : memref<1x32xf32, #tpu.memory_space<vmem>>, vector<1x32xf32>
    %14 = vector.broadcast %13 : vector<1x32xf32> to vector<8x32xf32>
    %15 = arith.mulf %12, %14 : vector<8x32xf32>
    %c0_13 = arith.constant 0 : index
    %c0_14 = arith.constant 0 : index
    %16 = vector.load %arg7[%c0_13, %c0_14] : memref<1x32xf32, #tpu.memory_space<vmem>>, vector<1x32xf32>
    %17 = vector.broadcast %16 : vector<1x32xf32> to vector<8x32xf32>
    %18 = arith.addf %15, %17 : vector<8x32xf32>
    %cst_15 = arith.constant 0.000000e+00 : f32
    %19 = vector.broadcast %cst_15 : f32 to vector<8x32xf32>
    %20 = arith.maximumf %18, %19 : vector<8x32xf32>
    %c0_16 = arith.constant 0 : index
    %c0_17 = arith.constant 0 : index
    %21 = vector.load %arg8[%c0_16, %c0_17] : memref<32x1xf32, #tpu.memory_space<vmem>>, vector<32x1xf32>
    %cst_18 = arith.constant dense<0.000000e+00> : vector<8x1xf32>
    %22 = tpu.matmul %20, %21, %cst_18 {dimension_numbers = #tpu.dot_dimension_numbers<[1], [0], [0], [1], [0, 0, 1, 1], [], []>} : vector<8x32xf32>, vector<32x1xf32>, vector<8x1xf32> -> vector<8x1xf32>
    %c0_19 = arith.constant 0 : index
    %c0_20 = arith.constant 0 : index
    %23 = vector.load %arg9[%c0_19, %c0_20] : memref<1x1xf32, #tpu.memory_space<vmem>>, vector<1x1xf32>
    %24 = vector.broadcast %23 : vector<1x1xf32> to vector<8x1xf32>
    %25 = arith.addf %22, %24 : vector<8x1xf32>
    %26 = math.tanh %25 : vector<8x1xf32>
    %c0_21 = arith.constant 0 : index
    %c0_22 = arith.constant 0 : index
    %27 = vector.load %arg10[%c0_21, %c0_22] : memref<8x1xf32, #tpu.memory_space<vmem>>, vector<8x1xf32>
    tpu.vector_store %arg10[%c0_21, %c0_22], %26 {strides = array<i32>} : memref<8x1xf32, #tpu.memory_space<vmem>>, vector<8x1xf32>,
    return
  }
  func.func @transform_0(%arg0: i32) -> (i32, i32) {
    %c0_i32 = arith.constant 0 : i32
    %c0_i32_0 = arith.constant 0 : i32
    return %arg0, %c0_i32 : i32, i32
  }
  func.func @transform_1(%arg0: i32) -> (i32, i32) {
    %c0_i32 = arith.constant 0 : i32
    %c0_i32_0 = arith.constant 0 : i32
    %c0_i32_1 = arith.constant 0 : i32
    return %c0_i32, %c0_i32_0 : i32, i32
  }
  func.func @transform_2(%arg0: i32) -> (i32, i32) {
    %c0_i32 = arith.constant 0 : i32
    %c0_i32_0 = arith.constant 0 : i32
    %c0_i32_1 = arith.constant 0 : i32
    return %c0_i32, %c0_i32_0 : i32, i32
  }
  func.func @transform_3(%arg0: i32) -> (i32, i32) {
    %c0_i32 = arith.constant 0 : i32
    %c0_i32_0 = arith.constant 0 : i32
    %c0_i32_1 = arith.constant 0 : i32
    return %c0_i32, %c0_i32_0 : i32, i32
  }
  func.func @transform_4(%arg0: i32) -> (i32, i32) {
    %c0_i32 = arith.constant 0 : i32
    %c0_i32_0 = arith.constant 0 : i32
    %c0_i32_1 = arith.constant 0 : i32
    return %c0_i32, %c0_i32_0 : i32, i32
  }
  func.func @transform_5(%arg0: i32) -> (i32, i32) {
    %c0_i32 = arith.constant 0 : i32
    %c0_i32_0 = arith.constant 0 : i32
    %c0_i32_1 = arith.constant 0 : i32
    return %c0_i32, %c0_i32_0 : i32, i32
  }
  func.func @transform_6(%arg0: i32) -> (i32, i32) {
    %c0_i32 = arith.constant 0 : i32
    %c0_i32_0 = arith.constant 0 : i32
    %c0_i32_1 = arith.constant 0 : i32
    return %c0_i32, %c0_i32_0 : i32, i32
  }
  func.func @transform_7(%arg0: i32) -> (i32, i32) {
    %c0_i32 = arith.constant 0 : i32
    %c0_i32_0 = arith.constant 0 : i32
    %c0_i32_1 = arith.constant 0 : i32
    return %c0_i32, %c0_i32_0 : i32, i32
  }
  func.func @transform_8(%arg0: i32) -> (i32, i32) {
    %c0_i32 = arith.constant 0 : i32
    %c0_i32_0 = arith.constant 0 : i32
    %c0_i32_1 = arith.constant 0 : i32
    return %c0_i32, %c0_i32_0 : i32, i32
  }
  func.func @transform_9(%arg0: i32) -> (i32, i32) {
    %c0_i32 = arith.constant 0 : i32
    %c0_i32_0 = arith.constant 0 : i32
    return %arg0, %c0_i32 : i32, i32
  }
}

module attributes {stable_mosaic.version = 11 : i64} {
  func.func @_mlp_kernel(%arg0: i32, %arg1: memref<8x16xf32, #tpu.memory_space<vmem>>, %arg2: memref<16x32xf32, #tpu.memory_space<vmem>>, %arg3: memref<1x32xf32, #tpu.memory_space<vmem>>, %arg4: memref<1x32xf32, #tpu.memory_space<vmem>>, %arg5: memref<32x32xf32, #tpu.memory_space<vmem>>, %arg6: memref<1x32xf32, #tpu.memory_space<vmem>>, %arg7: memref<1x32xf32, #tpu.memory_space<vmem>>, %arg8: memref<32x1xf32, #tpu.memory_space<vmem>>, %arg9: memref<1x1xf32, #tpu.memory_space<vmem>>, %arg10: memref<8x1xf32, #tpu.memory_space<vmem>>) attributes {dimension_semantics = [#tpu.dimension_semantics<parallel>], iteration_bounds = array<i64: 1>, scalar_prefetch = 0 : i64, scratch_operands = 0 : i64, tpu.core_type = #tpu.core_type<tc>, window_params = [{transform_indices = @transform_0, window_bounds = array<i64: 8, 16>}, {pipeline_mode = #tpu.pipeline_mode<synchronous>, transform_indices = @transform_1, window_bounds = array<i64: 16, 32>}, {pipeline_mode = #tpu.pipeline_mode<synchronous>, transform_indices = @transform_2, window_bounds = array<i64: 1, 32>}, {pipeline_mode = #tpu.pipeline_mode<synchronous>, transform_indices = @transform_3, window_bounds = array<i64: 1, 32>}, {pipeline_mode = #tpu.pipeline_mode<synchronous>, transform_indices = @transform_4, window_bounds = array<i64: 32, 32>}, {pipeline_mode = #tpu.pipeline_mode<synchronous>, transform_indices = @transform_5, window_bounds = array<i64: 1, 32>}, {pipeline_mode = #tpu.pipeline_mode<synchronous>, transform_indices = @transform_6, window_bounds = array<i64: 1, 32>}, {pipeline_mode = #tpu.pipeline_mode<synchronous>, transform_indices = @transform_7, window_bounds = array<i64: 32, 1>}, {pipeline_mode = #tpu.pipeline_mode<synchronous>, transform_indices = @transform_8, window_bounds = array<i64: 1, 1>}, {transform_indices = @transform_9, window_bounds = array<i64: 8, 1>}]} {
    %c0 = arith.constant 0 : index
    %c0_0 = arith.constant 0 : index
    %0 = vector.load %arg1[%c0, %c0_0] : memref<8x16xf32, #tpu.memory_space<vmem>>, vector<8x16xf32>
    %c0_1 = arith.constant 0 : index
    %c0_2 = arith.constant 0 : index
    %1 = vector.load %arg2[%c0_1, %c0_2] : memref<16x32xf32, #tpu.memory_space<vmem>>, vector<16x32xf32>
    %cst = arith.constant dense<0.000000e+00> : vector<8x32xf32>
    %2 = tpu.matmul %0, %1, %cst {dimension_numbers = #tpu.dot_dimension_numbers<[1], [0], [0], [1], [0, 0, 1, 1], [], []>} : vector<8x16xf32>, vector<16x32xf32>, vector<8x32xf32> -> vector<8x32xf32>
    %c0_3 = arith.constant 0 : index
    %c0_4 = arith.constant 0 : index
    %3 = vector.load %arg3[%c0_3, %c0_4] : memref<1x32xf32, #tpu.memory_space<vmem>>, vector<1x32xf32>
    %4 = vector.broadcast %3 : vector<1x32xf32> to vector<8x32xf32>
    %5 = arith.mulf %2, %4 : vector<8x32xf32>
    %c0_5 = arith.constant 0 : index
    %c0_6 = arith.constant 0 : index
    %6 = vector.load %arg4[%c0_5, %c0_6] : memref<1x32xf32, #tpu.memory_space<vmem>>, vector<1x32xf32>
    %7 = vector.broadcast %6 : vector<1x32xf32> to vector<8x32xf32>
    %8 = arith.addf %5, %7 : vector<8x32xf32>
    %cst_7 = arith.constant 0.000000e+00 : f32
    %9 = vector.broadcast %cst_7 : f32 to vector<8x32xf32>
    %10 = arith.maximumf %8, %9 : vector<8x32xf32>
    %c0_8 = arith.constant 0 : index
    %c0_9 = arith.constant 0 : index
    %11 = vector.load %arg5[%c0_8, %c0_9] : memref<32x32xf32, #tpu.memory_space<vmem>>, vector<32x32xf32>
    %cst_10 = arith.constant dense<0.000000e+00> : vector<8x32xf32>
    %12 = tpu.matmul %10, %11, %cst_10 {dimension_numbers = #tpu.dot_dimension_numbers<[1], [0], [0], [1], [0, 0, 1, 1], [], []>} : vector<8x32xf32>, vector<32x32xf32>, vector<8x32xf32> -> vector<8x32xf32>
    %c0_11 = arith.constant 0 : index
    %c0_12 = arith.constant 0 : index
    %13 = vector.load %arg6[%c0_11, %c0_12] : memref<1x32xf32, #tpu.memory_space<vmem>>, vector<1x32xf32>
    %14 = vector.broadcast %13 : vector<1x32xf32> to vector<8x32xf32>
    %15 = arith.mulf %12, %14 : vector<8x32xf32>
    %c0_13 = arith.constant 0 : index
    %c0_14 = arith.constant 0 : index
    %16 = vector.load %arg7[%c0_13, %c0_14] : memref<1x32xf32, #tpu.memory_space<vmem>>, vector<1x32xf32>
    %17 = vector.broadcast %16 : vector<1x32xf32> to vector<8x32xf32>
    %18 = arith.addf %15, %17 : vector<8x32xf32>
    %cst_15 = arith.constant 0.000000e+00 : f32
    %19 = vector.broadcast %cst_15 : f32 to vector<8x32xf32>
    %20 = arith.maximumf %18, %19 : vector<8x32xf32>
    %c0_16 = arith.constant 0 : index
    %c0_17 = arith.constant 0 : index
    %21 = vector.load %arg8[%c0_16, %c0_17] : memref<32x1xf32, #tpu.memory_space<vmem>>, vector<32x1xf32>
    %cst_18 = arith.constant dense<0.000000e+00> : vector<8x1xf32>
    %22 = tpu.matmul %20, %21, %cst_18 {dimension_numbers = #tpu.dot_dimension_numbers<[1], [0], [0], [1], [0, 0, 1, 1], [], []>} : vector<8x32xf32>, vector<32x1xf32>, vector<8x1xf32> -> vector<8x1xf32>
    %c0_19 = arith.constant 0 : index
    %c0_20 = arith.constant 0 : index
    %23 = vector.load %arg9[%c0_19, %c0_20] : memref<1x1xf32, #tpu.memory_space<vmem>>, vector<1x1xf32>
    %24 = vector.broadcast %23 : vector<1x1xf32> to vector<8x1xf32>
    %25 = arith.addf %22, %24 : vector<8x1xf32>
    %26 = math.tanh %25 : vector<8x1xf32>
    %c0_21 = arith.constant 0 : index
    %c0_22 = arith.constant 0 : index
    %27 = vector.load %arg10[%c0_21, %c0_22] : memref<8x1xf32, #tpu.memory_space<vmem>>, vector<8x1xf32>
    tpu.vector_store %arg10[%c0_21, %c0_22], %26 {strides = array<i32>} : memref<8x1xf32, #tpu.memory_space<vmem>>, vector<8x1xf32>,
    return
  }
  func.func @transform_0(%arg0: i32) -> (i32, i32) {
    %c0_i32 = arith.constant 0 : i32
    %c0_i32_0 = arith.constant 0 : i32
    return %arg0, %c0_i32 : i32, i32
  }
  func.func @transform_1(%arg0: i32) -> (i32, i32) {
    %c0_i32 = arith.constant 0 : i32
    %c0_i32_0 = arith.constant 0 : i32
    %c0_i32_1 = arith.constant 0 : i32
    return %c0_i32, %c0_i32_0 : i32, i32
  }
  func.func @transform_2(%arg0: i32) -> (i32, i32) {
    %c0_i32 = arith.constant 0 : i32
    %c0_i32_0 = arith.constant 0 : i32
    %c0_i32_1 = arith.constant 0 : i32
    return %c0_i32, %c0_i32_0 : i32, i32
  }
  func.func @transform_3(%arg0: i32) -> (i32, i32) {
    %c0_i32 = arith.constant 0 : i32
    %c0_i32_0 = arith.constant 0 : i32
    %c0_i32_1 = arith.constant 0 : i32
    return %c0_i32, %c0_i32_0 : i32, i32
  }
  func.func @transform_4(%arg0: i32) -> (i32, i32) {
    %c0_i32 = arith.constant 0 : i32
    %c0_i32_0 = arith.constant 0 : i32
    %c0_i32_1 = arith.constant 0 : i32
    return %c0_i32, %c0_i32_0 : i32, i32
  }
  func.func @transform_5(%arg0: i32) -> (i32, i32) {
    %c0_i32 = arith.constant 0 : i32
    %c0_i32_0 = arith.constant 0 : i32
    %c0_i32_1 = arith.constant 0 : i32
    return %c0_i32, %c0_i32_0 : i32, i32
  }
  func.func @transform_6(%arg0: i32) -> (i32, i32) {
    %c0_i32 = arith.constant 0 : i32
    %c0_i32_0 = arith.constant 0 : i32
    %c0_i32_1 = arith.constant 0 : i32
    return %c0_i32, %c0_i32_0 : i32, i32
  }
  func.func @transform_7(%arg0: i32) -> (i32, i32) {
    %c0_i32 = arith.constant 0 : i32
    %c0_i32_0 = arith.constant 0 : i32
    %c0_i32_1 = arith.constant 0 : i32
    return %c0_i32, %c0_i32_0 : i32, i32
  }
  func.func @transform_8(%arg0: i32) -> (i32, i32) {
    %c0_i32 = arith.constant 0 : i32
    %c0_i32_0 = arith.constant 0 : i32
    %c0_i32_1 = arith.constant 0 : i32
    return %c0_i32, %c0_i32_0 : i32, i32
  }
  func.func @transform_9(%arg0: i32) -> (i32, i32) {
    %c0_i32 = arith.constant 0 : i32
    %c0_i32_0 = arith.constant 0 : i32
    return %arg0, %c0_i32 : i32, i32
  }
}

</mosaic_0001>

<llo_original>
// kernel: tpu_custom_call.1
$region0: #{tpu_custom_call.1}
  #allocation0 [shape = 'u32[]', space=smem, size = 0x4, offset = 0x4, fixed_abs, tag = 'smem constant byte address 0x4 - core index']
  #allocation1 [shape = 'u32[144,128]{1,0:T(1,128)}', space=vmem, size = 0x12000, scoped, tag = 'internal scratch']
  #allocation2 [shape = 'f32[1,1]{1,0:T(1,128)S(1)}', space=vmem, size = 0x200, scoped, tag = 'scoped memory for tpu_custom_call.1']
  %s0 = inlined_call_operand.vmem [shape: f32[8,16], index: 0, kind: input, shape index: {}]
  %s1 = inlined_call_operand.hbm [shape: f32[16,32], index: 1, kind: input, shape index: {}]
  %s2 = inlined_call_operand.vmem [shape: f32[1,32], index: 2, kind: input, shape index: {}]
  %s3 = inlined_call_operand.vmem [shape: f32[1,32], index: 3, kind: input, shape index: {}]
  %s4 = inlined_call_operand.vmem [shape: f32[32,32], index: 4, kind: input, shape index: {}]
  %s5 = inlined_call_operand.vmem [shape: f32[1,32], index: 5, kind: input, shape index: {}]
  %s6 = inlined_call_operand.vmem [shape: f32[1,32], index: 6, kind: input, shape index: {}]
  %s7 = inlined_call_operand.vmem [shape: f32[32,1], index: 7, kind: input, shape index: {}]
  %s8 = inlined_call_operand.<no memory space> [shape: f32[1,1], index: 8, kind: input, shape index: {}]
  %s9 = inlined_call_operand.vmem [shape: f32[8,1], index: 9, kind: output, shape index: {}]
  %s10 = sld [smem:[#allocation0]]
  $region50: #{tpu_custom_call.1} parent=0
    _
  %s12 = ssub.s32 1, %s10
  %s13 = scalar_select 0, %s12, %s10
  %v14 = vstv %s8
  %15 = vst [vmem:[#allocation2] sm:$0x1] %v14
  $region1: #{tpu_custom_call.1} parent=0
    #allocation3 [shape = 'u8[8192]{0}', space=vmem, size = 0x2000, scoped, tag = 'input window, operand 1, single buffered']
    #allocation4 [shape = 's32[1]{0}', space=sflag, size = 0x4, scoped, tag = 'scoped memory for tpu_custom_call.1']
    %16 = vsyncpa [#allocation4], 0
    // Predicated region
    $region2: #{tpu_custom_call.1} parent=1 // pred_check
      _
    $region3: #{tpu_custom_call.1} parent=1 // pred_check_branch
      %18 = sbr.rel (0) target = $region5
    $region4: #{tpu_custom_call.1} parent=1 // pred_region
      _
    $region5: #{tpu_custom_call.1} parent=1 // pred_fallthru
      _
    // Predicated region
    $region6: #{tpu_custom_call.1} parent=1 // pred_check
      _
    $region7: #{tpu_custom_call.1} parent=1 // pred_check_branch
      %20 = sbr.rel (0) target = $region9
    $region8: #{tpu_custom_call.1} parent=1 // pred_region
      %s22 = ssub.s32 256, 256
      %23 = vsyncadd [#allocation4], %s22
      %s24 = sshll.u32 [#allocation3], 4
      %s25 = int_to_ptr.vmem [resolvable:$true] %s24
      %30 = dma.hbm_to_vmem [thread:$0]  %s1, 256, %s25, [#allocation4], 128, 128, 8
    $region9: #{tpu_custom_call.1} parent=1 // pred_fallthru
      _
    // Predicated region
    $region10: #{tpu_custom_call.1} parent=1 // pred_check
      _
    $region11: #{tpu_custom_call.1} parent=1 // pred_check_branch
      %32 = sbr.rel (0) target = $region13
    $region12: #{tpu_custom_call.1} parent=1 // pred_region
      _
    $region13: #{tpu_custom_call.1} parent=1 // pred_fallthru
      _
    // Predicated region
    $region14: #{tpu_custom_call.1} parent=1 // pred_check
      _
    $region15: #{tpu_custom_call.1} parent=1 // pred_check_branch
      %34 = sbr.rel (0) target = $region17
    $region16: #{tpu_custom_call.1} parent=1 // pred_region
      _
    $region17: #{tpu_custom_call.1} parent=1 // pred_fallthru
      _
    // Predicated region
    $region18: #{tpu_custom_call.1} parent=1 // pred_check
      _
    $region19: #{tpu_custom_call.1} parent=1 // pred_check_branch
      %36 = sbr.rel (0) target = $region21
    $region20: #{tpu_custom_call.1} parent=1 // pred_region
      _
    $region21: #{tpu_custom_call.1} parent=1 // pred_fallthru
      _
    // Predicated region
    $region22: #{tpu_custom_call.1} parent=1 // pred_check
      _
    $region23: #{tpu_custom_call.1} parent=1 // pred_check_branch
      %38 = sbr.rel (0) target = $region25
    $region24: #{tpu_custom_call.1} parent=1 // pred_region
      _
    $region25: #{tpu_custom_call.1} parent=1 // pred_fallthru
      _
    // Predicated region
    $region26: #{tpu_custom_call.1} parent=1 // pred_check
      _
    $region27: #{tpu_custom_call.1} parent=1 // pred_check_branch
      %40 = sbr.rel (0) target = $region29
    $region28: #{tpu_custom_call.1} parent=1 // pred_region
      _
    $region29: #{tpu_custom_call.1} parent=1 // pred_fallthru
      _
    // Predicated region
    $region30: #{tpu_custom_call.1} parent=1 // pred_check
      _
    $region31: #{tpu_custom_call.1} parent=1 // pred_check_branch
      %42 = sbr.rel (0) target = $region33
    $region32: #{tpu_custom_call.1} parent=1 // pred_region
      _
    $region33: #{tpu_custom_call.1} parent=1 // pred_fallthru
      _
    // Predicated region
    $region34: #{tpu_custom_call.1} parent=1 // pred_check
      _
    $region35: #{tpu_custom_call.1} parent=1 // pred_check_branch
      %44 = sbr.rel (0) target = $region37
    $region36: #{tpu_custom_call.1} parent=1 // pred_region
      _
    $region37: #{tpu_custom_call.1} parent=1 // pred_fallthru
      _
    // Predicated region
    $region38: #{tpu_custom_call.1} parent=1 // pred_check
      _
    $region39: #{tpu_custom_call.1} parent=1 // pred_check_branch
      %46 = sbr.rel (0) target = $region41
    $region40: #{tpu_custom_call.1} parent=1 // pred_region
      %47 = dma.done [#allocation4], 256
    $region41: #{tpu_custom_call.1} parent=1 // pred_fallthru
      _
    %v48 = vld [vmem:[%s0] sm:$0xff]
    %v49 = vld [vmem:[#allocation3] sm:$0xff]
    %v50 = vld [vmem:[#allocation3 + $0x8] sm:$0xff]
    %vm51 = vcmask 130048
    %v53 = vsel %vm51, %v48, 0
    %55 = vmatprep.subr.mxu0 0.0
    %56 = vmatpush1.msra.mxu0 0.0
    %57 = vmatprep.subr.mxu0 0.0
    %58 = vmatpush1.msra.mxu0 0.0
    %59 = vmatprep.subr.mxu0 0.0
    %60 = vmatpush1.msra.mxu0 0.0
    %61 = vmatprep.subr.mxu0 0.0
    %62 = vmatpush1.msra.mxu0 0.0
    %63 = vmatprep.subr.mxu0 0.0
    %64 = vmatpush1.msra.mxu0 0.0
    %65 = vmatprep.subr.mxu0 0.0
    %66 = vmatpush1.msra.mxu0 0.0
    %67 = vmatprep.subr.mxu0 0.0
    %68 = vmatpush1.msra.mxu0 0.0
    %69 = vmatprep.subr.mxu0 0.0
    %70 = vmatpush1.msra.mxu0 0.0
    %71 = vmatprep.subr.mxu0 0.0
    %72 = vmatpush1.msra.mxu0 0.0
    %73 = vmatprep.subr.mxu0 0.0
    %74 = vmatpush1.msra.mxu0 0.0
    %75 = vmatprep.subr.mxu0 0.0
    %76 = vmatpush1.msra.mxu0 0.0
    %77 = vmatprep.subr.mxu0 0.0
    %78 = vmatpush1.msra.mxu0 0.0
    %79 = vmatprep.subr.mxu0 0.0
    %80 = vmatpush1.msra.mxu0 0.0
    %81 = vmatprep.subr.mxu0 0.0
    %82 = vmatpush1.msra.mxu0 0.0
    %83 = vmatprep.subr.mxu0 0.0
    %84 = vmatpush1.msra.mxu0 %v50
    %85 = vmatprep.subr.mxu0 0.0
    %86 = vmatpush1.msra.mxu0 %v49
    %87 = vmatprep.subr.mxu0 0.0
    %88 = vmatpush2.msra.mxu0 0.0
    %89 = vmatprep.subr.mxu0 0.0
    %90 = vmatpush2.msra.mxu0 0.0
    %91 = vmatprep.subr.mxu0 0.0
    %92 = vmatpush2.msra.mxu0 0.0
    %93 = vmatprep.subr.mxu0 0.0
    %94 = vmatpush2.msra.mxu0 0.0
    %95 = vmatprep.subr.mxu0 0.0
    %96 = vmatpush2.msra.mxu0 0.0
    %97 = vmatprep.subr.mxu0 0.0
    %98 = vmatpush2.msra.mxu0 0.0
    %99 = vmatprep.subr.mxu0 0.0
    %100 = vmatpush2.msra.mxu0 0.0
    %101 = vmatprep.subr.mxu0 0.0
    %102 = vmatpush2.msra.mxu0 0.0
    %103 = vmatprep.subr.mxu0 0.0
    %104 = vmatpush2.msra.mxu0 0.0
    %105 = vmatprep.subr.mxu0 0.0
    %106 = vmatpush2.msra.mxu0 0.0
    %107 = vmatprep.subr.mxu0 0.0
    %108 = vmatpush2.msra.mxu0 0.0
    %109 = vmatprep.subr.mxu0 0.0
    %110 = vmatpush2.msra.mxu0 0.0
    %111 = vmatprep.subr.mxu0 0.0
    %112 = vmatpush2.msra.mxu0 0.0
    %113 = vmatprep.subr.mxu0 0.0
    %114 = vmatpush2.msra.mxu0 0.0
    %115 = vmatprep.subr.mxu0 0.0
    %116 = vmatpush2.msra.mxu0 0.0
    %117 = vmatprep.subr.mxu0 0.0
    %118 = vmatpush2.msra.mxu0 0.0
    %119 = vmatprep.mubr.f32.mxu0 0.0
    %120 = vmatmul.mubr.f32.gmra.mxu0 %v53
    %v121 = vpop.f32.mrf.mxu0
    %v122 = vadd.f32 0.0, %v121
    %v123 = vpop.f32.mrf.mxu0
    %124 = vdwg.mxu0
    %v125 = vld [vmem:[%s2] sm:$0x1]
    %v127 = vlaneseq
    %v128 = vshrl.u32 %v127, 7
    %v129 = vsub.s32 0, %v128
    %v130 = vrot.slane %v125, %v129
    %v132 = vmul.f32 %v122, %v130
    %v133 = vld [vmem:[%s3] sm:$0x1]
    %v135 = vlaneseq
    %v136 = vshrl.u32 %v135, 7
    %v137 = vsub.s32 0, %v136
    %v138 = vrot.slane %v133, %v137
    %v140 = vadd.f32 %v132, %v138
    %v141 = vmax.f32 %v140, 0.0
    %v142 = vld [vmem:[%s4] sm:$0xff]
    %v143 = vld [vmem:[%s4 + $0x8] sm:$0xff]
    %v144 = vld [vmem:[%s4 + $0x10] sm:$0xff]
    %v145 = vld [vmem:[%s4 + $0x18] sm:$0xff]
    %vm146 = vcmask 261120
    %v148 = vsel %vm146, %v141, 0
    %150 = vmatprep.subr.mxu0 0.0
    %151 = vmatpush1.msra.mxu0 0.0
    %152 = vmatprep.subr.mxu0 0.0
    %153 = vmatpush1.msra.mxu0 0.0
    %154 = vmatprep.subr.mxu0 0.0
    %155 = vmatpush1.msra.mxu0 0.0
    %156 = vmatprep.subr.mxu0 0.0
    %157 = vmatpush1.msra.mxu0 0.0
    %158 = vmatprep.subr.mxu0 0.0
    %159 = vmatpush1.msra.mxu0 0.0
    %160 = vmatprep.subr.mxu0 0.0
    %161 = vmatpush1.msra.mxu0 0.0
    %162 = vmatprep.subr.mxu0 0.0
    %163 = vmatpush1.msra.mxu0 0.0
    %164 = vmatprep.subr.mxu0 0.0
    %165 = vmatpush1.msra.mxu0 0.0
    %166 = vmatprep.subr.mxu0 0.0
    %167 = vmatpush1.msra.mxu0 0.0
    %168 = vmatprep.subr.mxu0 0.0
    %169 = vmatpush1.msra.mxu0 0.0
    %170 = vmatprep.subr.mxu0 0.0
    %171 = vmatpush1.msra.mxu0 0.0
    %172 = vmatprep.subr.mxu0 0.0
    %173 = vmatpush1.msra.mxu0 0.0
    %174 = vmatprep.subr.mxu0 0.0
    %175 = vmatpush1.msra.mxu0 %v145
    %176 = vmatprep.subr.mxu0 0.0
    %177 = vmatpush1.msra.mxu0 %v144
    %178 = vmatprep.subr.mxu0 0.0
    %179 = vmatpush1.msra.mxu0 %v143
    %180 = vmatprep.subr.mxu0 0.0
    %181 = vmatpush1.msra.mxu0 %v142
    %182 = vmatprep.subr.mxu0 0.0
    %183 = vmatpush2.msra.mxu0 0.0
    %184 = vmatprep.subr.mxu0 0.0
    %185 = vmatpush2.msra.mxu0 0.0
    %186 = vmatprep.subr.mxu0 0.0
    %187 = vmatpush2.msra.mxu0 0.0
    %188 = vmatprep.subr.mxu0 0.0
    %189 = vmatpush2.msra.mxu0 0.0
    %190 = vmatprep.subr.mxu0 0.0
    %191 = vmatpush2.msra.mxu0 0.0
    %192 = vmatprep.subr.mxu0 0.0
    %193 = vmatpush2.msra.mxu0 0.0
    %194 = vmatprep.subr.mxu0 0.0
    %195 = vmatpush2.msra.mxu0 0.0
    %196 = vmatprep.subr.mxu0 0.0
    %197 = vmatpush2.msra.mxu0 0.0
    %198 = vmatprep.subr.mxu0 0.0
    %199 = vmatpush2.msra.mxu0 0.0
    %200 = vmatprep.subr.mxu0 0.0
    %201 = vmatpush2.msra.mxu0 0.0
    %202 = vmatprep.subr.mxu0 0.0
    %203 = vmatpush2.msra.mxu0 0.0
    %204 = vmatprep.subr.mxu0 0.0
    %205 = vmatpush2.msra.mxu0 0.0
    %206 = vmatprep.subr.mxu0 0.0
    %207 = vmatpush2.msra.mxu0 0.0
    %208 = vmatprep.subr.mxu0 0.0
    %209 = vmatpush2.msra.mxu0 0.0
    %210 = vmatprep.subr.mxu0 0.0
    %211 = vmatpush2.msra.mxu0 0.0
    %212 = vmatprep.subr.mxu0 0.0
    %213 = vmatpush2.msra.mxu0 0.0
    %214 = vmatprep.mubr.f32.mxu0 0.0
    %215 = vmatmul.mubr.f32.gmra.mxu0 %v148
    %v216 = vpop.f32.mrf.mxu0
    %v217 = vadd.f32 0.0, %v216
    %v218 = vpop.f32.mrf.mxu0
    %219 = vdwg.mxu0
    %v220 = vld [vmem:[%s5] sm:$0x1]
    %v222 = vlaneseq
    %v223 = vshrl.u32 %v222, 7
    %v224 = vsub.s32 0, %v223
    %v225 = vrot.slane %v220, %v224
    %v227 = vmul.f32 %v217, %v225
    %v228 = vld [vmem:[%s6] sm:$0x1]
    %v230 = vlaneseq
    %v231 = vshrl.u32 %v230, 7
    %v232 = vsub.s32 0, %v231
    %v233 = vrot.slane %v228, %v232
    %v235 = vadd.f32 %v227, %v233
    %v236 = vmax.f32 %v235, 0.0
    %v237 = vld [vmem:[%s7] sm:$0xff]
    %v238 = vld [vmem:[%s7 + $0x8] sm:$0xff]
    %v239 = vld [vmem:[%s7 + $0x10] sm:$0xff]
    %v240 = vld [vmem:[%s7 + $0x18] sm:$0xff]
    %v241 = vld [vmem:[#allocation2] sm:$0x1]
    %v243 = vlaneseq
    %v244 = vshrl.u32 %v243, 7
    %v245 = vsub.s32 0, %v244
    %v246 = vrot.slane %v241, %v245
    %v249 = vsel %vm146, %v236, 0
    %251 = vmatprep.subr.mxu0 0.0
    %252 = vmatpush1.msra.mxu0 0.0
    %253 = vmatprep.subr.mxu0 0.0
    %254 = vmatpush1.msra.mxu0 0.0
    %255 = vmatprep.subr.mxu0 0.0
    %256 = vmatpush1.msra.mxu0 0.0
    %257 = vmatprep.subr.mxu0 0.0
    %258 = vmatpush1.msra.mxu0 0.0
    %259 = vmatprep.subr.mxu0 0.0
    %260 = vmatpush1.msra.mxu0 0.0
    %261 = vmatprep.subr.mxu0 0.0
    %262 = vmatpush1.msra.mxu0 0.0
    %263 = vmatprep.subr.mxu0 0.0
    %264 = vmatpush1.msra.mxu0 0.0
    %265 = vmatprep.subr.mxu0 0.0
    %266 = vmatpush1.msra.mxu0 0.0
    %267 = vmatprep.subr.mxu0 0.0
    %268 = vmatpush1.msra.mxu0 0.0
    %269 = vmatprep.subr.mxu0 0.0
    %270 = vmatpush1.msra.mxu0 0.0
    %271 = vmatprep.subr.mxu0 0.0
    %272 = vmatpush1.msra.mxu0 0.0
    %273 = vmatprep.subr.mxu0 0.0
    %274 = vmatpush1.msra.mxu0 0.0
    %275 = vmatprep.subr.mxu0 0.0
    %276 = vmatpush1.msra.mxu0 %v240
    %277 = vmatprep.subr.mxu0 0.0
    %278 = vmatpush1.msra.mxu0 %v239
    %279 = vmatprep.subr.mxu0 0.0
    %280 = vmatpush1.msra.mxu0 %v238
    %281 = vmatprep.subr.mxu0 0.0
    %282 = vmatpush1.msra.mxu0 %v237
    %283 = vmatprep.subr.mxu0 0.0
    %284 = vmatpush2.msra.mxu0 0.0
    %285 = vmatprep.subr.mxu0 0.0
    %286 = vmatpush2.msra.mxu0 0.0
    %287 = vmatprep.subr.mxu0 0.0
    %288 = vmatpush2.msra.mxu0 0.0
    %289 = vmatprep.subr.mxu0 0.0
    %290 = vmatpush2.msra.mxu0 0.0
    %291 = vmatprep.subr.mxu0 0.0
    %292 = vmatpush2.msra.mxu0 0.0
    %293 = vmatprep.subr.mxu0 0.0
    %294 = vmatpush2.msra.mxu0 0.0
    %295 = vmatprep.subr.mxu0 0.0
    %296 = vmatpush2.msra.mxu0 0.0
    %297 = vmatprep.subr.mxu0 0.0
    %298 = vmatpush2.msra.mxu0 0.0
    %299 = vmatprep.subr.mxu0 0.0
    %300 = vmatpush2.msra.mxu0 0.0
    %301 = vmatprep.subr.mxu0 0.0
    %302 = vmatpush2.msra.mxu0 0.0
    %303 = vmatprep.subr.mxu0 0.0
    %304 = vmatpush2.msra.mxu0 0.0
    %305 = vmatprep.subr.mxu0 0.0
    %306 = vmatpush2.msra.mxu0 0.0
    %307 = vmatprep.subr.mxu0 0.0
    %308 = vmatpush2.msra.mxu0 0.0
    %309 = vmatprep.subr.mxu0 0.0
    %310 = vmatpush2.msra.mxu0 0.0
    %311 = vmatprep.subr.mxu0 0.0
    %312 = vmatpush2.msra.mxu0 0.0
    %313 = vmatprep.subr.mxu0 0.0
    %314 = vmatpush2.msra.mxu0 0.0
    %315 = vmatprep.mubr.f32.mxu0 0.0
    %316 = vmatmul.mubr.f32.gmra.mxu0 %v249
    %v317 = vpop.f32.mrf.mxu0
    %v318 = vadd.f32 %v246, %v317
    %v319 = vpop.f32.mrf.mxu0
    %320 = vdwg.mxu0
    %v321 = vtanh.pop %v318
    %vm322 = vcmask 7168
    %323 = vst.msk [vmem:[%s9] sm:$0xff] %vm322, %v321
    // Predicated region
    $region42: #{tpu_custom_call.1} parent=1 // pred_check
      _
    $region43: #{tpu_custom_call.1} parent=1 // pred_check_branch
      %325 = sbr.rel (0) target = $region45
    $region44: #{tpu_custom_call.1} parent=1 // pred_region
      _
    $region45: #{tpu_custom_call.1} parent=1 // pred_fallthru
      _
    // Predicated region
    $region46: #{tpu_custom_call.1} parent=1 // pred_check
      _
    $region47: #{tpu_custom_call.1} parent=1 // pred_check_branch
      %327 = sbr.rel (0) target = $region49
    $region48: #{tpu_custom_call.1} parent=1 // pred_region
      _
    $region49: #{tpu_custom_call.1} parent=1 // pred_fallthru
      _
    %328 = vsyncpa [#allocation4], 1

// kernel: tpu_custom_call.1
$region0: #{tpu_custom_call.1}
  #allocation0 [shape = 'u32[]', space=smem, size = 0x4, offset = 0x4, fixed_abs, tag = 'smem constant byte address 0x4 - core index']
  #allocation1 [shape = 'u32[144,128]{1,0:T(1,128)}', space=vmem, size = 0x12000, scoped, tag = 'internal scratch']
  #allocation2 [shape = 'f32[1,1]{1,0:T(1,128)S(1)}', space=vmem, size = 0x200, scoped, tag = 'scoped memory for tpu_custom_call.1']
  %s0 = inlined_call_operand.vmem [shape: f32[8,16], index: 0, kind: input, shape index: {}]
  %s1 = inlined_call_operand.hbm [shape: f32[16,32], index: 1, kind: input, shape index: {}]
  %s2 = inlined_call_operand.vmem [shape: f32[1,32], index: 2, kind: input, shape index: {}]
  %s3 = inlined_call_operand.vmem [shape: f32[1,32], index: 3, kind: input, shape index: {}]
  %s4 = inlined_call_operand.vmem [shape: f32[32,32], index: 4, kind: input, shape index: {}]
  %s5 = inlined_call_operand.vmem [shape: f32[1,32], index: 5, kind: input, shape index: {}]
  %s6 = inlined_call_operand.vmem [shape: f32[1,32], index: 6, kind: input, shape index: {}]
  %s7 = inlined_call_operand.vmem [shape: f32[32,1], index: 7, kind: input, shape index: {}]
  %s8 = inlined_call_operand.<no memory space> [shape: f32[1,1], index: 8, kind: input, shape index: {}]
  %s9 = inlined_call_operand.vmem [shape: f32[8,1], index: 9, kind: output, shape index: {}]
  %s10 = sld [smem:[#allocation0]]
  $region50: #{tpu_custom_call.1} parent=0
    _
  %s12 = ssub.s32 1, %s10
  %s13 = scalar_select 0, %s12, %s10
  %v14 = vstv %s8
  %15 = vst [vmem:[#allocation2] sm:$0x1] %v14
  $region1: #{tpu_custom_call.1} parent=0
    #allocation3 [shape = 'u8[8192]{0}', space=vmem, size = 0x2000, scoped, tag = 'input window, operand 1, single buffered']
    #allocation4 [shape = 's32[1]{0}', space=sflag, size = 0x4, scoped, tag = 'scoped memory for tpu_custom_call.1']
    %16 = vsyncpa [#allocation4], 0
    // Predicated region
    $region2: #{tpu_custom_call.1} parent=1 // pred_check
      _
    $region3: #{tpu_custom_call.1} parent=1 // pred_check_branch
      %18 = sbr.rel (0) target = $region5
    $region4: #{tpu_custom_call.1} parent=1 // pred_region
      _
    $region5: #{tpu_custom_call.1} parent=1 // pred_fallthru
      _
    // Predicated region
    $region6: #{tpu_custom_call.1} parent=1 // pred_check
      _
    $region7: #{tpu_custom_call.1} parent=1 // pred_check_branch
      %20 = sbr.rel (0) target = $region9
    $region8: #{tpu_custom_call.1} parent=1 // pred_region
      %s22 = ssub.s32 256, 256
      %23 = vsyncadd [#allocation4], %s22
      %s24 = sshll.u32 [#allocation3], 4
      %s25 = int_to_ptr.vmem [resolvable:$true] %s24
      %30 = dma.hbm_to_vmem [thread:$0]  %s1, 256, %s25, [#allocation4], 128, 128, 8
    $region9: #{tpu_custom_call.1} parent=1 // pred_fallthru
      _
    // Predicated region
    $region10: #{tpu_custom_call.1} parent=1 // pred_check
      _
    $region11: #{tpu_custom_call.1} parent=1 // pred_check_branch
      %32 = sbr.rel (0) target = $region13
    $region12: #{tpu_custom_call.1} parent=1 // pred_region
      _
    $region13: #{tpu_custom_call.1} parent=1 // pred_fallthru
      _
    // Predicated region
    $region14: #{tpu_custom_call.1} parent=1 // pred_check
      _
    $region15: #{tpu_custom_call.1} parent=1 // pred_check_branch
      %34 = sbr.rel (0) target = $region17
    $region16: #{tpu_custom_call.1} parent=1 // pred_region
      _
    $region17: #{tpu_custom_call.1} parent=1 // pred_fallthru
      _
    // Predicated region
    $region18: #{tpu_custom_call.1} parent=1 // pred_check
      _
    $region19: #{tpu_custom_call.1} parent=1 // pred_check_branch
      %36 = sbr.rel (0) target = $region21
    $region20: #{tpu_custom_call.1} parent=1 // pred_region
      _
    $region21: #{tpu_custom_call.1} parent=1 // pred_fallthru
      _
    // Predicated region
    $region22: #{tpu_custom_call.1} parent=1 // pred_check
      _
    $region23: #{tpu_custom_call.1} parent=1 // pred_check_branch
      %38 = sbr.rel (0) target = $region25
    $region24: #{tpu_custom_call.1} parent=1 // pred_region
      _
    $region25: #{tpu_custom_call.1} parent=1 // pred_fallthru
      _
    // Predicated region
    $region26: #{tpu_custom_call.1} parent=1 // pred_check
      _
    $region27: #{tpu_custom_call.1} parent=1 // pred_check_branch
      %40 = sbr.rel (0) target = $region29
    $region28: #{tpu_custom_call.1} parent=1 // pred_region
      _
    $region29: #{tpu_custom_call.1} parent=1 // pred_fallthru
      _
    // Predicated region
    $region30: #{tpu_custom_call.1} parent=1 // pred_check
      _
    $region31: #{tpu_custom_call.1} parent=1 // pred_check_branch
      %42 = sbr.rel (0) target = $region33
    $region32: #{tpu_custom_call.1} parent=1 // pred_region
      _
    $region33: #{tpu_custom_call.1} parent=1 // pred_fallthru
      _
    // Predicated region
    $region34: #{tpu_custom_call.1} parent=1 // pred_check
      _
    $region35: #{tpu_custom_call.1} parent=1 // pred_check_branch
      %44 = sbr.rel (0) target = $region37
    $region36: #{tpu_custom_call.1} parent=1 // pred_region
      _
    $region37: #{tpu_custom_call.1} parent=1 // pred_fallthru
      _
    // Predicated region
    $region38: #{tpu_custom_call.1} parent=1 // pred_check
      _
    $region39: #{tpu_custom_call.1} parent=1 // pred_check_branch
      %46 = sbr.rel (0) target = $region41
    $region40: #{tpu_custom_call.1} parent=1 // pred_region
      %47 = dma.done [#allocation4], 256
    $region41: #{tpu_custom_call.1} parent=1 // pred_fallthru
      _
    %v48 = vld [vmem:[%s0] sm:$0xff]
    %v49 = vld [vmem:[#allocation3] sm:$0xff]
    %v50 = vld [vmem:[#allocation3 + $0x8] sm:$0xff]
    %vm51 = vcmask 130048
    %v53 = vsel %vm51, %v48, 0
    %55 = vmatprep.subr.mxu0 0.0
    %56 = vmatpush1.msra.mxu0 0.0
    %57 = vmatprep.subr.mxu0 0.0
    %58 = vmatpush1.msra.mxu0 0.0
    %59 = vmatprep.subr.mxu0 0.0
    %60 = vmatpush1.msra.mxu0 0.0
    %61 = vmatprep.subr.mxu0 0.0
    %62 = vmatpush1.msra.mxu0 0.0
    %63 = vmatprep.subr.mxu0 0.0
    %64 = vmatpush1.msra.mxu0 0.0
    %65 = vmatprep.subr.mxu0 0.0
    %66 = vmatpush1.msra.mxu0 0.0
    %67 = vmatprep.subr.mxu0 0.0
    %68 = vmatpush1.msra.mxu0 0.0
    %69 = vmatprep.subr.mxu0 0.0
    %70 = vmatpush1.msra.mxu0 0.0
    %71 = vmatprep.subr.mxu0 0.0
    %72 = vmatpush1.msra.mxu0 0.0
    %73 = vmatprep.subr.mxu0 0.0
    %74 = vmatpush1.msra.mxu0 0.0
    %75 = vmatprep.subr.mxu0 0.0
    %76 = vmatpush1.msra.mxu0 0.0
    %77 = vmatprep.subr.mxu0 0.0
    %78 = vmatpush1.msra.mxu0 0.0
    %79 = vmatprep.subr.mxu0 0.0
    %80 = vmatpush1.msra.mxu0 0.0
    %81 = vmatprep.subr.mxu0 0.0
    %82 = vmatpush1.msra.mxu0 0.0
    %83 = vmatprep.subr.mxu0 0.0
    %84 = vmatpush1.msra.mxu0 %v50
    %85 = vmatprep.subr.mxu0 0.0
    %86 = vmatpush1.msra.mxu0 %v49
    %87 = vmatprep.subr.mxu0 0.0
    %88 = vmatpush2.msra.mxu0 0.0
    %89 = vmatprep.subr.mxu0 0.0
    %90 = vmatpush2.msra.mxu0 0.0
    %91 = vmatprep.subr.mxu0 0.0
    %92 = vmatpush2.msra.mxu0 0.0
    %93 = vmatprep.subr.mxu0 0.0
    %94 = vmatpush2.msra.mxu0 0.0
    %95 = vmatprep.subr.mxu0 0.0
    %96 = vmatpush2.msra.mxu0 0.0
    %97 = vmatprep.subr.mxu0 0.0
    %98 = vmatpush2.msra.mxu0 0.0
    %99 = vmatprep.subr.mxu0 0.0
    %100 = vmatpush2.msra.mxu0 0.0
    %101 = vmatprep.subr.mxu0 0.0
    %102 = vmatpush2.msra.mxu0 0.0
    %103 = vmatprep.subr.mxu0 0.0
    %104 = vmatpush2.msra.mxu0 0.0
    %105 = vmatprep.subr.mxu0 0.0
    %106 = vmatpush2.msra.mxu0 0.0
    %107 = vmatprep.subr.mxu0 0.0
    %108 = vmatpush2.msra.mxu0 0.0
    %109 = vmatprep.subr.mxu0 0.0
    %110 = vmatpush2.msra.mxu0 0.0
    %111 = vmatprep.subr.mxu0 0.0
    %112 = vmatpush2.msra.mxu0 0.0
    %113 = vmatprep.subr.mxu0 0.0
    %114 = vmatpush2.msra.mxu0 0.0
    %115 = vmatprep.subr.mxu0 0.0
    %116 = vmatpush2.msra.mxu0 0.0
    %117 = vmatprep.subr.mxu0 0.0
    %118 = vmatpush2.msra.mxu0 0.0
    %119 = vmatprep.mubr.f32.mxu0 0.0
    %120 = vmatmul.mubr.f32.gmra.mxu0 %v53
    %v121 = vpop.f32.mrf.mxu0
    %v122 = vadd.f32 0.0, %v121
    %v123 = vpop.f32.mrf.mxu0
    %124 = vdwg.mxu0
    %v125 = vld [vmem:[%s2] sm:$0x1]
    %v127 = vlaneseq
    %v128 = vshrl.u32 %v127, 7
    %v129 = vsub.s32 0, %v128
    %v130 = vrot.slane %v125, %v129
    %v132 = vmul.f32 %v122, %v130
    %v133 = vld [vmem:[%s3] sm:$0x1]
    %v135 = vlaneseq
    %v136 = vshrl.u32 %v135, 7
    %v137 = vsub.s32 0, %v136
    %v138 = vrot.slane %v133, %v137
    %v140 = vadd.f32 %v132, %v138
    %v141 = vmax.f32 %v140, 0.0
    %v142 = vld [vmem:[%s4] sm:$0xff]
    %v143 = vld [vmem:[%s4 + $0x8] sm:$0xff]
    %v144 = vld [vmem:[%s4 + $0x10] sm:$0xff]
    %v145 = vld [vmem:[%s4 + $0x18] sm:$0xff]
    %vm146 = vcmask 261120
    %v148 = vsel %vm146, %v141, 0
    %150 = vmatprep.subr.mxu0 0.0
    %151 = vmatpush1.msra.mxu0 0.0
    %152 = vmatprep.subr.mxu0 0.0
    %153 = vmatpush1.msra.mxu0 0.0
    %154 = vmatprep.subr.mxu0 0.0
    %155 = vmatpush1.msra.mxu0 0.0
    %156 = vmatprep.subr.mxu0 0.0
    %157 = vmatpush1.msra.mxu0 0.0
    %158 = vmatprep.subr.mxu0 0.0
    %159 = vmatpush1.msra.mxu0 0.0
    %160 = vmatprep.subr.mxu0 0.0
    %161 = vmatpush1.msra.mxu0 0.0
    %162 = vmatprep.subr.mxu0 0.0
    %163 = vmatpush1.msra.mxu0 0.0
    %164 = vmatprep.subr.mxu0 0.0
    %165 = vmatpush1.msra.mxu0 0.0
    %166 = vmatprep.subr.mxu0 0.0
    %167 = vmatpush1.msra.mxu0 0.0
    %168 = vmatprep.subr.mxu0 0.0
    %169 = vmatpush1.msra.mxu0 0.0
    %170 = vmatprep.subr.mxu0 0.0
    %171 = vmatpush1.msra.mxu0 0.0
    %172 = vmatprep.subr.mxu0 0.0
    %173 = vmatpush1.msra.mxu0 0.0
    %174 = vmatprep.subr.mxu0 0.0
    %175 = vmatpush1.msra.mxu0 %v145
    %176 = vmatprep.subr.mxu0 0.0
    %177 = vmatpush1.msra.mxu0 %v144
    %178 = vmatprep.subr.mxu0 0.0
    %179 = vmatpush1.msra.mxu0 %v143
    %180 = vmatprep.subr.mxu0 0.0
    %181 = vmatpush1.msra.mxu0 %v142
    %182 = vmatprep.subr.mxu0 0.0
    %183 = vmatpush2.msra.mxu0 0.0
    %184 = vmatprep.subr.mxu0 0.0
    %185 = vmatpush2.msra.mxu0 0.0
    %186 = vmatprep.subr.mxu0 0.0
    %187 = vmatpush2.msra.mxu0 0.0
    %188 = vmatprep.subr.mxu0 0.0
    %189 = vmatpush2.msra.mxu0 0.0
    %190 = vmatprep.subr.mxu0 0.0
    %191 = vmatpush2.msra.mxu0 0.0
    %192 = vmatprep.subr.mxu0 0.0
    %193 = vmatpush2.msra.mxu0 0.0
    %194 = vmatprep.subr.mxu0 0.0
    %195 = vmatpush2.msra.mxu0 0.0
    %196 = vmatprep.subr.mxu0 0.0
    %197 = vmatpush2.msra.mxu0 0.0
    %198 = vmatprep.subr.mxu0 0.0
    %199 = vmatpush2.msra.mxu0 0.0
    %200 = vmatprep.subr.mxu0 0.0
    %201 = vmatpush2.msra.mxu0 0.0
    %202 = vmatprep.subr.mxu0 0.0
    %203 = vmatpush2.msra.mxu0 0.0
    %204 = vmatprep.subr.mxu0 0.0
    %205 = vmatpush2.msra.mxu0 0.0
    %206 = vmatprep.subr.mxu0 0.0
    %207 = vmatpush2.msra.mxu0 0.0
    %208 = vmatprep.subr.mxu0 0.0
    %209 = vmatpush2.msra.mxu0 0.0
    %210 = vmatprep.subr.mxu0 0.0
    %211 = vmatpush2.msra.mxu0 0.0
    %212 = vmatprep.subr.mxu0 0.0
    %213 = vmatpush2.msra.mxu0 0.0
    %214 = vmatprep.mubr.f32.mxu0 0.0
    %215 = vmatmul.mubr.f32.gmra.mxu0 %v148
    %v216 = vpop.f32.mrf.mxu0
    %v217 = vadd.f32 0.0, %v216
    %v218 = vpop.f32.mrf.mxu0
    %219 = vdwg.mxu0
    %v220 = vld [vmem:[%s5] sm:$0x1]
    %v222 = vlaneseq
    %v223 = vshrl.u32 %v222, 7
    %v224 = vsub.s32 0, %v223
    %v225 = vrot.slane %v220, %v224
    %v227 = vmul.f32 %v217, %v225
    %v228 = vld [vmem:[%s6] sm:$0x1]
    %v230 = vlaneseq
    %v231 = vshrl.u32 %v230, 7
    %v232 = vsub.s32 0, %v231
    %v233 = vrot.slane %v228, %v232
    %v235 = vadd.f32 %v227, %v233
    %v236 = vmax.f32 %v235, 0.0
    %v237 = vld [vmem:[%s7] sm:$0xff]
    %v238 = vld [vmem:[%s7 + $0x8] sm:$0xff]
    %v239 = vld [vmem:[%s7 + $0x10] sm:$0xff]
    %v240 = vld [vmem:[%s7 + $0x18] sm:$0xff]
    %v241 = vld [vmem:[#allocation2] sm:$0x1]
    %v243 = vlaneseq
    %v244 = vshrl.u32 %v243, 7
    %v245 = vsub.s32 0, %v244
    %v246 = vrot.slane %v241, %v245
    %v249 = vsel %vm146, %v236, 0
    %251 = vmatprep.subr.mxu0 0.0
    %252 = vmatpush1.msra.mxu0 0.0
    %253 = vmatprep.subr.mxu0 0.0
    %254 = vmatpush1.msra.mxu0 0.0
    %255 = vmatprep.subr.mxu0 0.0
    %256 = vmatpush1.msra.mxu0 0.0
    %257 = vmatprep.subr.mxu0 0.0
    %258 = vmatpush1.msra.mxu0 0.0
    %259 = vmatprep.subr.mxu0 0.0
    %260 = vmatpush1.msra.mxu0 0.0
    %261 = vmatprep.subr.mxu0 0.0
    %262 = vmatpush1.msra.mxu0 0.0
    %263 = vmatprep.subr.mxu0 0.0
    %264 = vmatpush1.msra.mxu0 0.0
    %265 = vmatprep.subr.mxu0 0.0
    %266 = vmatpush1.msra.mxu0 0.0
    %267 = vmatprep.subr.mxu0 0.0
    %268 = vmatpush1.msra.mxu0 0.0
    %269 = vmatprep.subr.mxu0 0.0
    %270 = vmatpush1.msra.mxu0 0.0
    %271 = vmatprep.subr.mxu0 0.0
    %272 = vmatpush1.msra.mxu0 0.0
    %273 = vmatprep.subr.mxu0 0.0
    %274 = vmatpush1.msra.mxu0 0.0
    %275 = vmatprep.subr.mxu0 0.0
    %276 = vmatpush1.msra.mxu0 %v240
    %277 = vmatprep.subr.mxu0 0.0
    %278 = vmatpush1.msra.mxu0 %v239
    %279 = vmatprep.subr.mxu0 0.0
    %280 = vmatpush1.msra.mxu0 %v238
    %281 = vmatprep.subr.mxu0 0.0
    %282 = vmatpush1.msra.mxu0 %v237
    %283 = vmatprep.subr.mxu0 0.0
    %284 = vmatpush2.msra.mxu0 0.0
    %285 = vmatprep.subr.mxu0 0.0
    %286 = vmatpush2.msra.mxu0 0.0
    %287 = vmatprep.subr.mxu0 0.0
    %288 = vmatpush2.msra.mxu0 0.0
    %289 = vmatprep.subr.mxu0 0.0
    %290 = vmatpush2.msra.mxu0 0.0
    %291 = vmatprep.subr.mxu0 0.0
    %292 = vmatpush2.msra.mxu0 0.0
    %293 = vmatprep.subr.mxu0 0.0
    %294 = vmatpush2.msra.mxu0 0.0
    %295 = vmatprep.subr.mxu0 0.0
    %296 = vmatpush2.msra.mxu0 0.0
    %297 = vmatprep.subr.mxu0 0.0
    %298 = vmatpush2.msra.mxu0 0.0
    %299 = vmatprep.subr.mxu0 0.0
    %300 = vmatpush2.msra.mxu0 0.0
    %301 = vmatprep.subr.mxu0 0.0
    %302 = vmatpush2.msra.mxu0 0.0
    %303 = vmatprep.subr.mxu0 0.0
    %304 = vmatpush2.msra.mxu0 0.0
    %305 = vmatprep.subr.mxu0 0.0
    %306 = vmatpush2.msra.mxu0 0.0
    %307 = vmatprep.subr.mxu0 0.0
    %308 = vmatpush2.msra.mxu0 0.0
    %309 = vmatprep.subr.mxu0 0.0
    %310 = vmatpush2.msra.mxu0 0.0
    %311 = vmatprep.subr.mxu0 0.0
    %312 = vmatpush2.msra.mxu0 0.0
    %313 = vmatprep.subr.mxu0 0.0
    %314 = vmatpush2.msra.mxu0 0.0
    %315 = vmatprep.mubr.f32.mxu0 0.0
    %316 = vmatmul.mubr.f32.gmra.mxu0 %v249
    %v317 = vpop.f32.mrf.mxu0
    %v318 = vadd.f32 %v246, %v317
    %v319 = vpop.f32.mrf.mxu0
    %320 = vdwg.mxu0
    %v321 = vtanh.pop %v318
    %vm322 = vcmask 7168
    %323 = vst.msk [vmem:[%s9] sm:$0xff] %vm322, %v321
    // Predicated region
    $region42: #{tpu_custom_call.1} parent=1 // pred_check
      _
    $region43: #{tpu_custom_call.1} parent=1 // pred_check_branch
      %325 = sbr.rel (0) target = $region45
    $region44: #{tpu_custom_call.1} parent=1 // pred_region
      _
    $region45: #{tpu_custom_call.1} parent=1 // pred_fallthru
      _
    // Predicated region
    $region46: #{tpu_custom_call.1} parent=1 // pred_check
      _
    $region47: #{tpu_custom_call.1} parent=1 // pred_check_branch
      %327 = sbr.rel (0) target = $region49
    $region48: #{tpu_custom_call.1} parent=1 // pred_region
      _
    $region49: #{tpu_custom_call.1} parent=1 // pred_fallthru
      _
    %328 = vsyncpa [#allocation4], 1

</llo_original>
